<compile_context>
chip_gen: v7x
topology: tpu7x:2x2x1
jax: 0.10.0
libtpu: 0.0.40
codegen_flags: <defaults>
</compile_context>

<pallas_src>
import math

import jax
import jax.numpy as jnp
from jax import lax
from jax.experimental import pallas as pl
from jax.experimental.pallas import tpu as pltpu


# ---------------------------------------------------------------------------
# Fused kernel: stacked attention (all heads [+ batch]) + head-merge + Linear.
# One grid step per TensorCore's share of the batch.
# ---------------------------------------------------------------------------
def _mha_kernel(q_ref, k_ref, v_ref, cm_ref, wt_ref, b_ref, out_ref, attn_ref):
    # q_ref : (1, R, dk)       R = bpb*H*Lq   rows ordered (batch, head, q)
    # k_ref : (1, C, dk)       C = bpb*H*Lk   cols ordered (batch, head, k)
    # v_ref : (1, C, vdim)     block-diagonal over heads (built wrapper-side)
    # cm_ref: (1, R, C) int8   2 = keep score, 1 = user-masked, 0 = cross-block
    # wt_ref: (vdim, vdim)     W.T of nn.Linear (resident across grid steps)
    # b_ref : (1, vdim)
    # out_ref : (bpb, Lq, vdim)     attn_ref : (bpb, Lq, H*Lk)
    bpb, Lq, vdim = out_ref.shape
    HLk = attn_ref.shape[2]
    R = q_ref.shape[1]
    C = k_ref.shape[1]
    dk = q_ref.shape[2]
    H = R // (bpb * Lq)

    inv_sqrt_dk = jnp.float32(1.0 / math.sqrt(dk))

    # --- one stacked QK^T over all heads (and batches in this block) --------
    q = q_ref[0] * inv_sqrt_dk                               # (R, dk)
    k = k_ref[0]                                             # (C, dk)
    score = lax.dot_general(q, k, (((1,), (1,)), ((), ())),
                            preferred_element_type=jnp.float32)   # (R, C)

    # masked_fill:  user mask -> -65500.0 (matches torch); cross head/batch
    # entries -> -inf so they are EXACTLY 0 after exp (required for the
    # merge-by-sum below, including the fully-masked-row edge case).
    cm = cm_ref[0].astype(jnp.int32)
    fill = jnp.where(cm == 1, jnp.float32(-65500.0), -jnp.inf)
    score = jnp.where(cm == 2, score, fill)

    # --- softmax over the full stacked row (cross-block entries -> 0) ------
    m = jnp.max(score, axis=-1, keepdims=True)
    e = jnp.exp(score - m)
    denom = jnp.sum(e, axis=-1, keepdims=True)
    p = e / denom                                            # exact normalize

    # --- PV + output Linear, fused:  VW = blockdiag(V) @ W.T ; ctx = P @ VW -
    vw = jnp.dot(v_ref[0], wt_ref[...],
                 preferred_element_type=jnp.float32)         # (C, vdim)
    ctx = jnp.dot(p, vw, preferred_element_type=jnp.float32)  # (R, vdim)

    # --- head merge = sum over the H sublane blocks (cross terms exactly 0) -
    ctx_r = ctx.reshape(bpb, H, Lq, vdim)
    acc = ctx_r[:, 0]
    for h in range(1, H):                                    # tiny static loop
        acc = acc + ctx_r[:, h]
    out_ref[...] = acc + b_ref[...]                          # + bias

    # --- lane-dense merged attention: (bpb, Lq, H*Lk) -----------------------
    p_r = p.reshape(bpb, H, Lq, C)
    ph = p_r[:, 0]
    for h in range(1, H):
        ph = ph + p_r[:, h]                                  # (bpb, Lq, C)
    for i in range(bpb):                                     # static, bpb small
        attn_ref[i] = ph[i, :, i * HLk:(i + 1) * HLk]


# ---------------------------------------------------------------------------
# Wrapper
# ---------------------------------------------------------------------------
def _grid_steps(batch):
    """One grid step per TensorCore's share of the batch.

    v7x has 2 TCs/chip -> 2 parallel steps when the batch splits evenly;
    v5e/v6e have 1 TC -> a single step avoids per-grid-step fixed overhead."""
    try:
        kind = jax.devices()[0].device_kind.lower()
    except Exception:
        kind = ""
    two_tc = "7" in kind            # v7x-family device kinds contain "7"
    if two_tc and batch >= 2:
        return 2 if batch % 2 == 0 else batch
    return 1


def multi_head_attention(query, key, value, w, b, mask=None):
    """query/key: (B,H,L,dk), value: (B,H,L,dv), w: (vdim,vdim) [PyTorch (out,in)],
    b: (vdim,), mask: (B,1,Lq,Lk) or None.
    Returns (out (B,Lq,vdim), attn (B,H,Lq,Lk))."""
    B, H, Lq, dk = query.shape
    Lk = key.shape[2]
    dv = value.shape[3]
    vdim = H * dv

    nb = _grid_steps(B)             # number of grid steps
    bpb = B // nb                   # batches handled per step
    R = bpb * H * Lq                # stacked rows per step
    C = bpb * H * Lk                # stacked cols per step

    f32 = jnp.float32

    # --- stacked Q / K (rows ordered (batch, head, seq)) --------------------
    q_s = query.astype(f32).reshape(nb, R, dk)
    k_s = key.astype(f32).reshape(nb, C, dk)

    # --- block-diagonal V over heads: folds head-merge + Linear into matmuls
    eye_h = jnp.eye(H, dtype=f32)
    v_bd = (value.astype(f32)[:, :, :, None, :]
            * eye_h[None, :, None, :, None])                 # (B,H,Lk,H,dv)
    v_bd = v_bd.reshape(nb, C, vdim)

    # --- combined int8 code mask: 2 keep / 1 user-masked / 0 cross-block ----
    if mask is None:
        m01 = jnp.ones((B, Lq, Lk), dtype=jnp.int8)
    else:
        m01 = (mask.reshape(B, Lq, Lk) != 0).astype(jnp.int8)
    inblk = (jnp.eye(bpb, dtype=bool)[:, None, None, :, None, None]
             & jnp.eye(H, dtype=bool)[None, :, None, None, :, None])
    keep = inblk & (m01.reshape(nb, bpb, 1, Lq, 1, 1, Lk) != 0)
    code = jnp.where(keep, jnp.int8(2),
                     jnp.where(inblk, jnp.int8(1), jnp.int8(0)))
    cmask = jnp.broadcast_to(code, (nb, bpb, H, Lq, bpb, H, Lk))
    cmask = cmask.reshape(nb, R, C).astype(jnp.int8)

    # --- Linear params (nn.Linear weight is (out, in); pre-transpose once) --
    w_t = jnp.transpose(w).astype(f32)                       # (vdim, vdim)
    b2d = b.reshape(1, vdim).astype(f32)

    out, attn_m = pl.pallas_call(
        _mha_kernel,
        out_shape=(
            jax.ShapeDtypeStruct((B, Lq, vdim), f32),
            jax.ShapeDtypeStruct((B, Lq, H * Lk), f32),      # lane-dense attn
        ),
        grid_spec=pltpu.PrefetchScalarGridSpec(
            num_scalar_prefetch=0,
            grid=(nb,),
            in_specs=[
                pl.BlockSpec((1, R, dk), lambda g: (g, 0, 0)),
                pl.BlockSpec((1, C, dk), lambda g: (g, 0, 0)),
                pl.BlockSpec((1, C, vdim), lambda g: (g, 0, 0)),
                pl.BlockSpec((1, R, C), lambda g: (g, 0, 0)),
                pl.BlockSpec((vdim, vdim), lambda g: (0, 0)),   # weight resident
                pl.BlockSpec((1, vdim), lambda g: (0, 0)),      # bias resident
            ],
            out_specs=[
                pl.BlockSpec((bpb, Lq, vdim), lambda g: (g, 0, 0)),
                pl.BlockSpec((bpb, Lq, H * Lk), lambda g: (g, 0, 0)),
            ],
        ),
        compiler_params=pltpu.CompilerParams(
            dimension_semantics=("parallel",),   # feeds both v7x TCs when nb=2
        ),
    )(q_s, k_s, v_bd, cmask, w_t, b2d)

    # lane-dense (B, Lq, H*Lk) -> module's (B, H, Lq, Lk); cheap XLA plumbing.
    attn = attn_m.reshape(B, Lq, H, Lk).transpose(0, 2, 1, 3)
    return out, attn


# ---------------------------------------------------------------------------
# Pure-JAX reference (mirrors the PyTorch forward) for a sanity check.
# ---------------------------------------------------------------------------
def _reference(query, key, value, w, b, mask):
    d_k = key.shape[-1]
    score = jnp.einsum("bhqd,bhkd->bhqk", query, key / math.sqrt(d_k))
    if mask is not None:
        score = jnp.where(mask == 0, -65500.0, score)
    p = jax.nn.softmax(score, axis=-1)
    x = jnp.einsum("bhqk,bhkd->bhqd", p, value)
    B, H, Lq, dv = x.shape
    x = jnp.transpose(x, (0, 2, 1, 3)).reshape(B, Lq, H * dv)
    return x @ w.T + b, p


if __name__ == "__main__":
    # Module config: headers=4, d_model=32, vdim=32, dropout=0.0 (eval path)
    headers = 4
    d_model = 32
    vdim = 32
    d_k = d_model // headers   # 8
    d_v = vdim // headers      # 8
    B, Lq, Lk = 2, 8, 8

    key_rng = jax.random.PRNGKey(0)
    kq, kk, kv, kw, kb, km = jax.random.split(key_rng, 6)

    query = jax.random.normal(kq, (B, headers, Lq, d_k), dtype=jnp.float32)
    key_ = jax.random.normal(kk, (B, headers, Lk, d_k), dtype=jnp.float32)
    value = jax.random.normal(kv, (B, headers, Lk, d_v), dtype=jnp.float32)

    # Deterministic nn.Linear(vdim, vdim) parameters (PyTorch layout (out, in)).
    w = jax.random.normal(kw, (vdim, vdim), dtype=jnp.float32) * (1.0 / math.sqrt(vdim))
    b = jax.random.normal(kb, (vdim,), dtype=jnp.float32) * 0.01

    # Mask: (B, 1, Lq, Lk), with some zeros to exercise masked_fill.
    mask = (jax.random.uniform(km, (B, 1, Lq, Lk)) > 0.2).astype(jnp.float32)

    out, attn = multi_head_attention(query, key_, value, w, b, mask=mask)
    out = jax.block_until_ready(out)
    attn = jax.block_until_ready(attn)

    ref_out, ref_attn = _reference(
        query, key_, value, w, b, jnp.broadcast_to(mask, (B, headers, Lq, Lk))
    )
    assert out.shape == (B, Lq, vdim)
    assert attn.shape == (B, headers, Lq, Lk)
    assert jnp.allclose(out, ref_out, atol=1e-4, rtol=1e-4)
    assert jnp.allclose(attn, ref_attn, atol=1e-5, rtol=1e-4)

    print("KERNEL_OK")
</pallas_src>

<mosaic_0001>
module attributes {stable_mosaic.version = 11 : i64} {
  func.func @_mha_kernel(%arg0: i32, %arg1: memref<1x64x8xf32, #tpu.memory_space<vmem>>, %arg2: memref<1x64x8xf32, #tpu.memory_space<vmem>>, %arg3: memref<1x64x32xf32, #tpu.memory_space<vmem>>, %arg4: memref<1x64x64xi8, #tpu.memory_space<vmem>>, %arg5: memref<32x32xf32, #tpu.memory_space<vmem>>, %arg6: memref<1x32xf32, #tpu.memory_space<vmem>>, %arg7: memref<2x8x32xf32, #tpu.memory_space<vmem>>, %arg8: memref<2x8x32xf32, #tpu.memory_space<vmem>>) attributes {dimension_semantics = [#tpu.dimension_semantics<parallel>], iteration_bounds = array<i64: 1>, scalar_prefetch = 0 : i64, scratch_operands = 0 : i64, tpu.core_type = #tpu.core_type<tc>, window_params = [{transform_indices = @transform_0, window_bounds = array<i64: 1, 64, 8>}, {transform_indices = @transform_1, window_bounds = array<i64: 1, 64, 8>}, {transform_indices = @transform_2, window_bounds = array<i64: 1, 64, 32>}, {transform_indices = @transform_3, window_bounds = array<i64: 1, 64, 64>}, {pipeline_mode = #tpu.pipeline_mode<synchronous>, transform_indices = @transform_4, window_bounds = array<i64: 32, 32>}, {pipeline_mode = #tpu.pipeline_mode<synchronous>, transform_indices = @transform_5, window_bounds = array<i64: 1, 32>}, {transform_indices = @transform_6, window_bounds = array<i64: 2, 8, 32>}, {transform_indices = @transform_7, window_bounds = array<i64: 2, 8, 32>}]} {
    %c0 = arith.constant 0 : index
    %c0_0 = arith.constant 0 : index
    %c0_1 = arith.constant 0 : index
    %0 = vector.load %arg1[%c0, %c0_0, %c0_1] : memref<1x64x8xf32, #tpu.memory_space<vmem>>, vector<1x64x8xf32>
    %1 = vector.shape_cast %0 : vector<1x64x8xf32> to vector<64x8xf32>
    %cst = arith.constant 0.353553385 : f32
    %2 = vector.broadcast %cst : f32 to vector<64x8xf32>
    %3 = arith.mulf %1, %2 : vector<64x8xf32>
    %c0_2 = arith.constant 0 : index
    %c0_3 = arith.constant 0 : index
    %c0_4 = arith.constant 0 : index
    %4 = vector.load %arg2[%c0_2, %c0_3, %c0_4] : memref<1x64x8xf32, #tpu.memory_space<vmem>>, vector<1x64x8xf32>
    %5 = vector.shape_cast %4 : vector<1x64x8xf32> to vector<64x8xf32>
    %cst_5 = arith.constant dense<0.000000e+00> : vector<64x64xf32>
    %6 = tpu.matmul %3, %5, %cst_5 {dimension_numbers = #tpu.dot_dimension_numbers<[1], [1], [0], [0], [0, 0, 1, 0], [], []>} : vector<64x8xf32>, vector<64x8xf32>, vector<64x64xf32> -> vector<64x64xf32>
    %c0_6 = arith.constant 0 : index
    %c0_7 = arith.constant 0 : index
    %c0_8 = arith.constant 0 : index
    %7 = vector.load %arg4[%c0_6, %c0_7, %c0_8] : memref<1x64x64xi8, #tpu.memory_space<vmem>>, vector<1x64x64xi8>
    %8 = vector.shape_cast %7 : vector<1x64x64xi8> to vector<64x64xi8>
    %9 = arith.extsi %8 : vector<64x64xi8> to vector<64x64xi32>
    %c1_i32 = arith.constant 1 : i32
    %10 = vector.broadcast %c1_i32 : i32 to vector<64x64xi32>
    %11 = arith.cmpi eq, %9, %10 : vector<64x64xi32>
    %cst_9 = arith.constant -6.550000e+04 : f32
    %cst_10 = arith.constant 0xFF800000 : f32
    %12 = vector.broadcast %cst_9 : f32 to vector<64x64xf32>
    %13 = vector.broadcast %cst_10 : f32 to vector<64x64xf32>
    %14 = arith.select %11, %12, %13 : vector<64x64xi1>, vector<64x64xf32>
    %c2_i32 = arith.constant 2 : i32
    %15 = vector.broadcast %c2_i32 : i32 to vector<64x64xi32>
    %16 = arith.cmpi eq, %9, %15 : vector<64x64xi32>
    %17 = arith.select %16, %6, %14 : vector<64x64xi1>, vector<64x64xf32>
    %cst_11 = arith.constant dense<0xFF800000> : vector<64xf32>
    %18 = vector.multi_reduction <maximumf>, %17, %cst_11 [1] : vector<64x64xf32> to vector<64xf32>
    %19 = vector.shape_cast %18 : vector<64xf32> to vector<64x1xf32>
    %20 = vector.broadcast %19 : vector<64x1xf32> to vector<64x64xf32>
    %21 = arith.subf %17, %20 : vector<64x64xf32>
    %22 = math.exp %21 : vector<64x64xf32>
    %cst_12 = arith.constant dense<0.000000e+00> : vector<64xf32>
    %23 = vector.multi_reduction <add>, %22, %cst_12 [1] : vector<64x64xf32> to vector<64xf32>
    %24 = vector.shape_cast %23 : vector<64xf32> to vector<64x1xf32>
    %25 = vector.broadcast %24 : vector<64x1xf32> to vector<64x64xf32>
    %26 = arith.divf %22, %25 : vector<64x64xf32>
    %c0_13 = arith.constant 0 : index
    %c0_14 = arith.constant 0 : index
    %c0_15 = arith.constant 0 : index
    %27 = vector.load %arg3[%c0_13, %c0_14, %c0_15] : memref<1x64x32xf32, #tpu.memory_space<vmem>>, vector<1x64x32xf32>
    %28 = vector.shape_cast %27 : vector<1x64x32xf32> to vector<64x32xf32>
    %c0_16 = arith.constant 0 : index
    %c0_17 = arith.constant 0 : index
    %29 = vector.load %arg5[%c0_16, %c0_17] : memref<32x32xf32, #tpu.memory_space<vmem>>, vector<32x32xf32>
    %cst_18 = arith.constant dense<0.000000e+00> : vector<64x32xf32>
    %30 = tpu.matmul %28, %29, %cst_18 {dimension_numbers = #tpu.dot_dimension_numbers<[1], [0], [0], [1], [0, 0, 1, 1], [], []>} : vector<64x32xf32>, vector<32x32xf32>, vector<64x32xf32> -> vector<64x32xf32>
    %cst_19 = arith.constant dense<0.000000e+00> : vector<64x32xf32>
    %31 = tpu.matmul %26, %30, %cst_19 {dimension_numbers = #tpu.dot_dimension_numbers<[1], [0], [0], [1], [0, 0, 1, 1], [], []>} : vector<64x64xf32>, vector<64x32xf32>, vector<64x32xf32> -> vector<64x32xf32>
    %32 = vector.shape_cast %31 : vector<64x32xf32> to vector<2x4x8x32xf32>
    %33 = vector.extract_strided_slice %32 {offsets = [0, 0, 0, 0], sizes = [2, 1, 8, 32], strides = [1, 1, 1, 1]} : vector<2x4x8x32xf32> to vector<2x1x8x32xf32>
    %34 = vector.shape_cast %33 : vector<2x1x8x32xf32> to vector<2x8x32xf32>
    %35 = vector.extract_strided_slice %32 {offsets = [0, 1, 0, 0], sizes = [2, 1, 8, 32], strides = [1, 1, 1, 1]} : vector<2x4x8x32xf32> to vector<2x1x8x32xf32>
    %36 = vector.shape_cast %35 : vector<2x1x8x32xf32> to vector<2x8x32xf32>
    %37 = arith.addf %34, %36 : vector<2x8x32xf32>
    %38 = vector.extract_strided_slice %32 {offsets = [0, 2, 0, 0], sizes = [2, 1, 8, 32], strides = [1, 1, 1, 1]} : vector<2x4x8x32xf32> to vector<2x1x8x32xf32>
    %39 = vector.shape_cast %38 : vector<2x1x8x32xf32> to vector<2x8x32xf32>
    %40 = arith.addf %37, %39 : vector<2x8x32xf32>
    %41 = vector.extract_strided_slice %32 {offsets = [0, 3, 0, 0], sizes = [2, 1, 8, 32], strides = [1, 1, 1, 1]} : vector<2x4x8x32xf32> to vector<2x1x8x32xf32>
    %42 = vector.shape_cast %41 : vector<2x1x8x32xf32> to vector<2x8x32xf32>
    %43 = arith.addf %40, %42 : vector<2x8x32xf32>
    %c0_20 = arith.constant 0 : index
    %c0_21 = arith.constant 0 : index
    %44 = vector.load %arg6[%c0_20, %c0_21] : memref<1x32xf32, #tpu.memory_space<vmem>>, vector<1x32xf32>
    %45 = vector.shape_cast %44 : vector<1x32xf32> to vector<1x1x32xf32>
    %46 = vector.broadcast %45 : vector<1x1x32xf32> to vector<2x8x32xf32>
    %47 = arith.addf %43, %46 : vector<2x8x32xf32>
    %c0_22 = arith.constant 0 : index
    %c0_23 = arith.constant 0 : index
    %c0_24 = arith.constant 0 : index
    %48 = vector.load %arg7[%c0_22, %c0_23, %c0_24] : memref<2x8x32xf32, #tpu.memory_space<vmem>>, vector<2x8x32xf32>
    tpu.vector_store %arg7[%c0_22, %c0_23, %c0_24], %47 {strides = array<i32>} : memref<2x8x32xf32, #tpu.memory_space<vmem>>, vector<2x8x32xf32>,
    %49 = vector.shape_cast %26 : vector<64x64xf32> to vector<2x4x8x64xf32>
    %50 = vector.extract_strided_slice %49 {offsets = [0, 0, 0, 0], sizes = [2, 1, 8, 64], strides = [1, 1, 1, 1]} : vector<2x4x8x64xf32> to vector<2x1x8x64xf32>
    %51 = vector.shape_cast %50 : vector<2x1x8x64xf32> to vector<2x8x64xf32>
    %52 = vector.extract_strided_slice %49 {offsets = [0, 1, 0, 0], sizes = [2, 1, 8, 64], strides = [1, 1, 1, 1]} : vector<2x4x8x64xf32> to vector<2x1x8x64xf32>
    %53 = vector.shape_cast %52 : vector<2x1x8x64xf32> to vector<2x8x64xf32>
    %54 = arith.addf %51, %53 : vector<2x8x64xf32>
    %55 = vector.extract_strided_slice %49 {offsets = [0, 2, 0, 0], sizes = [2, 1, 8, 64], strides = [1, 1, 1, 1]} : vector<2x4x8x64xf32> to vector<2x1x8x64xf32>
    %56 = vector.shape_cast %55 : vector<2x1x8x64xf32> to vector<2x8x64xf32>
    %57 = arith.addf %54, %56 : vector<2x8x64xf32>
    %58 = vector.extract_strided_slice %49 {offsets = [0, 3, 0, 0], sizes = [2, 1, 8, 64], strides = [1, 1, 1, 1]} : vector<2x4x8x64xf32> to vector<2x1x8x64xf32>
    %59 = vector.shape_cast %58 : vector<2x1x8x64xf32> to vector<2x8x64xf32>
    %60 = arith.addf %57, %59 : vector<2x8x64xf32>
    %61 = vector.extract_strided_slice %60 {offsets = [0, 0, 0], sizes = [1, 8, 32], strides = [1, 1, 1]} : vector<2x8x64xf32> to vector<1x8x32xf32>
    %62 = vector.shape_cast %61 : vector<1x8x32xf32> to vector<8x32xf32>
    %c0_25 = arith.constant 0 : index
    %c0_26 = arith.constant 0 : index
    %c0_27 = arith.constant 0 : index
    %63 = vector.load %arg8[%c0_25, %c0_26, %c0_27] : memref<2x8x32xf32, #tpu.memory_space<vmem>>, vector<1x8x32xf32>
    %64 = vector.shape_cast %63 : vector<1x8x32xf32> to vector<8x32xf32>
    %65 = vector.shape_cast %62 : vector<8x32xf32> to vector<1x8x32xf32>
    tpu.vector_store %arg8[%c0_25, %c0_26, %c0_27], %65 {strides = array<i32>} : memref<2x8x32xf32, #tpu.memory_space<vmem>>, vector<1x8x32xf32>,
    %66 = vector.extract_strided_slice %60 {offsets = [1, 0, 32], sizes = [1, 8, 32], strides = [1, 1, 1]} : vector<2x8x64xf32> to vector<1x8x32xf32>
    %67 = vector.shape_cast %66 : vector<1x8x32xf32> to vector<8x32xf32>
    %c1 = arith.constant 1 : index
    %c0_28 = arith.constant 0 : index
    %c0_29 = arith.constant 0 : index
    %68 = vector.load %arg8[%c1, %c0_28, %c0_29] : memref<2x8x32xf32, #tpu.memory_space<vmem>>, vector<1x8x32xf32>
    %69 = vector.shape_cast %68 : vector<1x8x32xf32> to vector<8x32xf32>
    %70 = vector.shape_cast %67 : vector<8x32xf32> to vector<1x8x32xf32>
    tpu.vector_store %arg8[%c1, %c0_28, %c0_29], %70 {strides = array<i32>} : memref<2x8x32xf32, #tpu.memory_space<vmem>>, vector<1x8x32xf32>,
    return
  }
  func.func @transform_0(%arg0: i32) -> (i32, i32, i32) {
    %c0_i32 = arith.constant 0 : i32
    %c0_i32_0 = arith.constant 0 : i32
    %c0_i32_1 = arith.constant 0 : i32
    return %arg0, %c0_i32, %c0_i32_0 : i32, i32, i32
  }
  func.func @transform_1(%arg0: i32) -> (i32, i32, i32) {
    %c0_i32 = arith.constant 0 : i32
    %c0_i32_0 = arith.constant 0 : i32
    %c0_i32_1 = arith.constant 0 : i32
    return %arg0, %c0_i32, %c0_i32_0 : i32, i32, i32
  }
  func.func @transform_2(%arg0: i32) -> (i32, i32, i32) {
    %c0_i32 = arith.constant 0 : i32
    %c0_i32_0 = arith.constant 0 : i32
    %c0_i32_1 = arith.constant 0 : i32
    return %arg0, %c0_i32, %c0_i32_0 : i32, i32, i32
  }
  func.func @transform_3(%arg0: i32) -> (i32, i32, i32) {
    %c0_i32 = arith.constant 0 : i32
    %c0_i32_0 = arith.constant 0 : i32
    %c0_i32_1 = arith.constant 0 : i32
    return %arg0, %c0_i32, %c0_i32_0 : i32, i32, i32
  }
  func.func @transform_4(%arg0: i32) -> (i32, i32) {
    %c0_i32 = arith.constant 0 : i32
    %c0_i32_0 = arith.constant 0 : i32
    %c0_i32_1 = arith.constant 0 : i32
    return %c0_i32, %c0_i32_0 : i32, i32
  }
  func.func @transform_5(%arg0: i32) -> (i32, i32) {
    %c0_i32 = arith.constant 0 : i32
    %c0_i32_0 = arith.constant 0 : i32
    %c0_i32_1 = arith.constant 0 : i32
    return %c0_i32, %c0_i32_0 : i32, i32
  }
  func.func @transform_6(%arg0: i32) -> (i32, i32, i32) {
    %c0_i32 = arith.constant 0 : i32
    %c0_i32_0 = arith.constant 0 : i32
    %c0_i32_1 = arith.constant 0 : i32
    return %arg0, %c0_i32, %c0_i32_0 : i32, i32, i32
  }
  func.func @transform_7(%arg0: i32) -> (i32, i32, i32) {
    %c0_i32 = arith.constant 0 : i32
    %c0_i32_0 = arith.constant 0 : i32
    %c0_i32_1 = arith.constant 0 : i32
    return %arg0, %c0_i32, %c0_i32_0 : i32, i32, i32
  }
}

</mosaic_0001>

<llo_original>
// kernel: tpu_custom_call.1
$region0: #{tpu_custom_call.1}
  #allocation0 [shape = 'u32[]', space=smem, size = 0x4, offset = 0x4, fixed_abs, tag = 'smem constant byte address 0x4 - core index']
  #allocation1 [shape = 'u32[144,128]{1,0:T(1,128)}', space=vmem, size = 0x12000, scoped, tag = 'internal scratch']
  %s0 = inlined_call_operand.vmem [shape: f32[1,64,8], index: 0, kind: input, shape index: {}]
  %s1 = inlined_call_operand.vmem [shape: f32[1,64,8], index: 1, kind: input, shape index: {}]
  %s2 = inlined_call_operand.vmem [shape: f32[1,64,32], index: 2, kind: input, shape index: {}]
  %s3 = inlined_call_operand.vmem [shape: s8[1,64,64], index: 3, kind: input, shape index: {}]
  %s4 = inlined_call_operand.vmem [shape: f32[32,32], index: 4, kind: input, shape index: {}]
  %s5 = inlined_call_operand.vmem [shape: f32[1,32], index: 5, kind: input, shape index: {}]
  %s6 = inlined_call_operand.hbm [shape: f32[2,8,32], index: 6, kind: output, shape index: {0}]
  %s7 = inlined_call_operand.hbm [shape: f32[2,8,32], index: 7, kind: output, shape index: {1}]
  %8 = xla_tuple %s6, %s7
  %s9 = sld [smem:[#allocation0]]
  $region42: #{tpu_custom_call.1} parent=0
    _
  %s11 = ssub.s32 1, %s9
  %s12 = scalar_select 0, %s11, %s9
  $region1: #{tpu_custom_call.1} parent=0
    #allocation2 [shape = 'u8[8192]{0}', space=vmem, size = 0x2000, scoped, tag = 'output window, operand 0, single buffered']
    #allocation3 [shape = 's32[1]{0}', space=sflag, size = 0x4, scoped, tag = 'scoped memory for tpu_custom_call.1']
    #allocation4 [shape = 'u8[8192]{0}', space=vmem, size = 0x2000, scoped, tag = 'output window, operand 1, single buffered']
    #allocation5 [shape = 's32[1]{0}', space=sflag, size = 0x4, scoped, tag = 'scoped memory for tpu_custom_call.1']
    %13 = vsyncpa [#allocation3], 0
    %14 = vsyncpa [#allocation5], 0
    // Predicated region
    $region2: #{tpu_custom_call.1} parent=1 // pred_check
      _
    $region3: #{tpu_custom_call.1} parent=1 // pred_check_branch
      %16 = sbr.rel (0) target = $region5
    $region4: #{tpu_custom_call.1} parent=1 // pred_region
      _
    $region5: #{tpu_custom_call.1} parent=1 // pred_fallthru
      _
    // Predicated region
    $region6: #{tpu_custom_call.1} parent=1 // pred_check
      _
    $region7: #{tpu_custom_call.1} parent=1 // pred_check_branch
      %18 = sbr.rel (0) target = $region9
    $region8: #{tpu_custom_call.1} parent=1 // pred_region
      _
    $region9: #{tpu_custom_call.1} parent=1 // pred_fallthru
      _
    // Predicated region
    $region10: #{tpu_custom_call.1} parent=1 // pred_check
      _
    $region11: #{tpu_custom_call.1} parent=1 // pred_check_branch
      %20 = sbr.rel (0) target = $region13
    $region12: #{tpu_custom_call.1} parent=1 // pred_region
      _
    $region13: #{tpu_custom_call.1} parent=1 // pred_fallthru
      _
    // Predicated region
    $region14: #{tpu_custom_call.1} parent=1 // pred_check
      _
    $region15: #{tpu_custom_call.1} parent=1 // pred_check_branch
      %22 = sbr.rel (0) target = $region17
    $region16: #{tpu_custom_call.1} parent=1 // pred_region
      _
    $region17: #{tpu_custom_call.1} parent=1 // pred_fallthru
      _
    // Predicated region
    $region18: #{tpu_custom_call.1} parent=1 // pred_check
      _
    $region19: #{tpu_custom_call.1} parent=1 // pred_check_branch
      %24 = sbr.rel (0) target = $region21
    $region20: #{tpu_custom_call.1} parent=1 // pred_region
      _
    $region21: #{tpu_custom_call.1} parent=1 // pred_fallthru
      _
    // Predicated region
    $region22: #{tpu_custom_call.1} parent=1 // pred_check
      _
    $region23: #{tpu_custom_call.1} parent=1 // pred_check_branch
      %26 = sbr.rel (0) target = $region25
    $region24: #{tpu_custom_call.1} parent=1 // pred_region
      _
    $region25: #{tpu_custom_call.1} parent=1 // pred_fallthru
      _
    %v27 = vld [vmem:[%s0] sm:$0xff]
    %v28 = vld [vmem:[%s0 + $0x8] sm:$0xff]
    %v29 = vld [vmem:[%s0 + $0x10] sm:$0xff]
    %v30 = vld [vmem:[%s0 + $0x18] sm:$0xff]
    %v31 = vld [vmem:[%s0 + $0x20] sm:$0xff]
    %v32 = vld [vmem:[%s0 + $0x28] sm:$0xff]
    %v33 = vld [vmem:[%s0 + $0x30] sm:$0xff]
    %v34 = vld [vmem:[%s0 + $0x38] sm:$0xff]
    %v35 = vmul.f32 %v27, 0.35355338
    %v36 = vmul.f32 %v28, 0.35355338
    %v37 = vmul.f32 %v29, 0.35355338
    %v38 = vmul.f32 %v30, 0.35355338
    %v39 = vmul.f32 %v31, 0.35355338
    %v40 = vmul.f32 %v32, 0.35355338
    %v41 = vmul.f32 %v33, 0.35355338
    %v42 = vmul.f32 %v34, 0.35355338
    %v43 = vld [vmem:[%s1] sm:$0xff]
    %v44 = vld [vmem:[%s1 + $0x8] sm:$0xff]
    %v45 = vld [vmem:[%s1 + $0x10] sm:$0xff]
    %v46 = vld [vmem:[%s1 + $0x18] sm:$0xff]
    %v47 = vld [vmem:[%s1 + $0x20] sm:$0xff]
    %v48 = vld [vmem:[%s1 + $0x28] sm:$0xff]
    %v49 = vld [vmem:[%s1 + $0x30] sm:$0xff]
    %v50 = vld [vmem:[%s1 + $0x38] sm:$0xff]
    %vm51 = vcmask 64512
    %v53 = vsel %vm51, %v35, 0
    %v56 = vsel %vm51, %v36, 0
    %v59 = vsel %vm51, %v37, 0
    %v62 = vsel %vm51, %v38, 0
    %v65 = vsel %vm51, %v39, 0
    %v68 = vsel %vm51, %v40, 0
    %v71 = vsel %vm51, %v41, 0
    %v74 = vsel %vm51, %v42, 0
    %v77 = vsel %vm51, %v43, 0
    %v80 = vsel %vm51, %v44, 0
    %v83 = vsel %vm51, %v45, 0
    %v86 = vsel %vm51, %v46, 0
    %v89 = vsel %vm51, %v47, 0
    %v92 = vsel %vm51, %v48, 0
    %v95 = vsel %vm51, %v49, 0
    %v98 = vsel %vm51, %v50, 0
    %100 = vmatprep.subr.mxu0 0.0
    %101 = vmatpush1.xpose.msra.mxu0 %v77
    %102 = vmatprep.subr.mxu0 0.0
    %103 = vmatpush1.xpose.msra.mxu0 %v80
    %104 = vmatprep.subr.mxu0 0.0
    %105 = vmatpush1.xpose.msra.mxu0 %v83
    %106 = vmatprep.subr.mxu0 0.0
    %107 = vmatpush1.xpose.msra.mxu0 %v86
    %108 = vmatprep.subr.mxu0 0.0
    %109 = vmatpush1.xpose.msra.mxu0 %v89
    %110 = vmatprep.subr.mxu0 0.0
    %111 = vmatpush1.xpose.msra.mxu0 %v92
    %112 = vmatprep.subr.mxu0 0.0
    %113 = vmatpush1.xpose.msra.mxu0 %v95
    %114 = vmatprep.subr.mxu0 0.0
    %115 = vmatpush1.xpose.msra.mxu0 %v98
    %116 = vmatprep.subr.mxu0 0.0
    %117 = vmatpush1.xpose.msra.mxu0 0.0
    %118 = vmatprep.subr.mxu0 0.0
    %119 = vmatpush1.xpose.msra.mxu0 0.0
    %120 = vmatprep.subr.mxu0 0.0
    %121 = vmatpush1.xpose.msra.mxu0 0.0
    %122 = vmatprep.subr.mxu0 0.0
    %123 = vmatpush1.xpose.msra.mxu0 0.0
    %124 = vmatprep.subr.mxu0 0.0
    %125 = vmatpush1.xpose.msra.mxu0 0.0
    %126 = vmatprep.subr.mxu0 0.0
    %127 = vmatpush1.xpose.msra.mxu0 0.0
    %128 = vmatprep.subr.mxu0 0.0
    %129 = vmatpush1.xpose.msra.mxu0 0.0
    %130 = vmatprep.subr.mxu0 0.0
    %131 = vmatpush1.xpose.msra.mxu0 0.0
    %132 = vmatprep.subr.mxu0 0.0
    %133 = vmatpush1.xpose.msra.mxu0 0.0
    %134 = vmatprep.subr.mxu0 0.0
    %135 = vmatpush1.xpose.msra.mxu0 0.0
    %136 = vmatprep.subr.mxu0 0.0
    %137 = vmatpush1.xpose.msra.mxu0 0.0
    %138 = vmatprep.subr.mxu0 0.0
    %139 = vmatpush1.xpose.msra.mxu0 0.0
    %140 = vmatprep.subr.mxu0 0.0
    %141 = vmatpush1.xpose.msra.mxu0 0.0
    %142 = vmatprep.subr.mxu0 0.0
    %143 = vmatpush1.xpose.msra.mxu0 0.0
    %144 = vmatprep.subr.mxu0 0.0
    %145 = vmatpush1.xpose.msra.mxu0 0.0
    %146 = vmatprep.subr.mxu0 0.0
    %147 = vmatpush1.xpose.msra.mxu0 0.0
    %148 = vmatprep.subr.mxu0 0.0
    %149 = vmatpush1.xpose.msra.mxu0 0.0
    %150 = vmatprep.subr.mxu0 0.0
    %151 = vmatpush1.xpose.msra.mxu0 0.0
    %152 = vmatprep.subr.mxu0 0.0
    %153 = vmatpush1.xpose.msra.mxu0 0.0
    %154 = vmatprep.subr.mxu0 0.0
    %155 = vmatpush1.xpose.msra.mxu0 0.0
    %156 = vmatprep.subr.mxu0 0.0
    %157 = vmatpush1.xpose.msra.mxu0 0.0
    %158 = vmatprep.subr.mxu0 0.0
    %159 = vmatpush1.xpose.msra.mxu0 0.0
    %160 = vmatprep.subr.mxu0 0.0
    %161 = vmatpush1.xpose.msra.mxu0 0.0
    %162 = vmatprep.subr.mxu0 0.0
    %163 = vmatpush1.xpose.msra.mxu0 0.0
    %164 = vmatprep.mubr.f32.mxu0 0.0
    %165 = vmatmul.mubr.f32.gmra.mrb[0].mxu0 %v53
    %v166 = vpop.f32.mrb[0].mxu0
    %v167 = vadd.f32 0.0, %v166
    %v168 = vpop.f32.mrb[0].mxu0
    %169 = vmatprep.mubr.f32.mxu0 0.0
    %170 = vmatmul.mubr.f32.gmra.mrb[0].mxu0 %v56
    %v171 = vpop.f32.mrb[0].mxu0
    %v172 = vadd.f32 0.0, %v171
    %v173 = vpop.f32.mrb[0].mxu0
    %174 = vmatprep.mubr.f32.mxu0 0.0
    %175 = vmatmul.mubr.f32.gmra.mrb[0].mxu0 %v59
    %v176 = vpop.f32.mrb[0].mxu0
    %v177 = vadd.f32 0.0, %v176
    %v178 = vpop.f32.mrb[0].mxu0
    %179 = vmatprep.mubr.f32.mxu0 0.0
    %180 = vmatmul.mubr.f32.gmra.mrb[0].mxu0 %v62
    %v181 = vpop.f32.mrb[0].mxu0
    %v182 = vadd.f32 0.0, %v181
    %v183 = vpop.f32.mrb[0].mxu0
    %184 = vmatprep.mubr.f32.mxu0 0.0
    %185 = vmatmul.mubr.f32.gmra.mrb[0].mxu0 %v65
    %v186 = vpop.f32.mrb[0].mxu0
    %v187 = vadd.f32 0.0, %v186
    %v188 = vpop.f32.mrb[0].mxu0
    %189 = vmatprep.mubr.f32.mxu0 0.0
    %190 = vmatmul.mubr.f32.gmra.mrb[0].mxu0 %v68
    %v191 = vpop.f32.mrb[0].mxu0
    %v192 = vadd.f32 0.0, %v191
    %v193 = vpop.f32.mrb[0].mxu0
    %194 = vmatprep.mubr.f32.mxu0 0.0
    %195 = vmatmul.mubr.f32.gmra.mrb[0].mxu0 %v71
    %v196 = vpop.f32.mrb[0].mxu0
    %v197 = vadd.f32 0.0, %v196
    %v198 = vpop.f32.mrb[0].mxu0
    %199 = vmatprep.mubr.f32.mxu0 0.0
    %200 = vmatmul.mubr.f32.gmra.mrb[0].mxu0 %v74
    %v201 = vpop.f32.mrb[0].mxu0
    %v202 = vadd.f32 0.0, %v201
    %v203 = vpop.f32.mrb[0].mxu0
    %204 = vdwg.mxu0
    %v205 = vld [vmem:[%s3] sm:$0xff]
    %v206 = vld [vmem:[%s3 + $0x8] sm:$0xff]
    %v207 = vunpack.c.0.s8 %v205
    %v208 = vunpack.c.1.s8 %v205
    %v209 = vunpack.c.2.s8 %v205
    %v210 = vunpack.c.3.s8 %v205
    %v211 = vunpack.c.0.s8 %v206
    %v212 = vunpack.c.1.s8 %v206
    %v213 = vunpack.c.2.s8 %v206
    %v214 = vunpack.c.3.s8 %v206
    %vm215 = vcmp.eq.s32.totalorder %v207, 1
    %vm216 = vcmp.eq.s32.totalorder %v208, 1
    %vm217 = vcmp.eq.s32.totalorder %v209, 1
    %vm218 = vcmp.eq.s32.totalorder %v210, 1
    %vm219 = vcmp.eq.s32.totalorder %v211, 1
    %vm220 = vcmp.eq.s32.totalorder %v212, 1
    %vm221 = vcmp.eq.s32.totalorder %v213, 1
    %vm222 = vcmp.eq.s32.totalorder %v214, 1
    %v223 = vsel %vm215, -65500.0, -inf
    %v224 = vsel %vm216, -65500.0, -inf
    %v225 = vsel %vm217, -65500.0, -inf
    %v226 = vsel %vm218, -65500.0, -inf
    %v227 = vsel %vm219, -65500.0, -inf
    %v228 = vsel %vm220, -65500.0, -inf
    %v229 = vsel %vm221, -65500.0, -inf
    %v230 = vsel %vm222, -65500.0, -inf
    %vm231 = vcmp.eq.s32.totalorder %v207, 2
    %vm232 = vcmp.eq.s32.totalorder %v208, 2
    %vm233 = vcmp.eq.s32.totalorder %v209, 2
    %vm234 = vcmp.eq.s32.totalorder %v210, 2
    %vm235 = vcmp.eq.s32.totalorder %v211, 2
    %vm236 = vcmp.eq.s32.totalorder %v212, 2
    %vm237 = vcmp.eq.s32.totalorder %v213, 2
    %vm238 = vcmp.eq.s32.totalorder %v214, 2
    %v239 = vsel %vm231, %v167, %v223
    %v240 = vsel %vm232, %v172, %v224
    %v241 = vsel %vm233, %v177, %v225
    %v242 = vsel %vm234, %v182, %v226
    %v243 = vsel %vm235, %v187, %v227
    %v244 = vsel %vm236, %v192, %v228
    %v245 = vsel %vm237, %v197, %v229
    %v246 = vsel %vm238, %v202, %v230
    %vm247 = vcmask 523264
    %v248 = vsel %vm247, %v239, -inf
    %249 = vmax.xlane.f32.xlu0 %v248
    %v250 = vpop.xlane.xlu0 %249
    %v251 = vsel %vm247, %v240, -inf
    %252 = vmax.xlane.f32.xlu0 %v251
    %v253 = vpop.xlane.xlu0 %252
    %v254 = vsel %vm247, %v241, -inf
    %255 = vmax.xlane.f32.xlu0 %v254
    %v256 = vpop.xlane.xlu0 %255
    %v257 = vsel %vm247, %v242, -inf
    %258 = vmax.xlane.f32.xlu0 %v257
    %v259 = vpop.xlane.xlu0 %258
    %v260 = vsel %vm247, %v243, -inf
    %261 = vmax.xlane.f32.xlu0 %v260
    %v262 = vpop.xlane.xlu0 %261
    %v263 = vsel %vm247, %v244, -inf
    %264 = vmax.xlane.f32.xlu0 %v263
    %v265 = vpop.xlane.xlu0 %264
    %v266 = vsel %vm247, %v245, -inf
    %267 = vmax.xlane.f32.xlu0 %v266
    %v268 = vpop.xlane.xlu0 %267
    %v269 = vsel %vm247, %v246, -inf
    %270 = vmax.xlane.f32.xlu0 %v269
    %v271 = vpop.xlane.xlu0 %270
    %v272 = vsub.f32 %v239, %v250
    %v273 = vsub.f32 %v240, %v253
    %v274 = vsub.f32 %v241, %v256
    %v275 = vsub.f32 %v242, %v259
    %v276 = vsub.f32 %v243, %v262
    %v277 = vsub.f32 %v244, %v265
    %v278 = vsub.f32 %v245, %v268
    %v279 = vsub.f32 %v246, %v271
    %v280 = vmul.f32 %v272, 1.442695
    %v281 = vpow.pop %v280
    %v282 = vmul.f32 %v273, 1.442695
    %v283 = vpow.pop %v282
    %v284 = vmul.f32 %v274, 1.442695
    %v285 = vpow.pop %v284
    %v286 = vmul.f32 %v275, 1.442695
    %v287 = vpow.pop %v286
    %v288 = vmul.f32 %v276, 1.442695
    %v289 = vpow.pop %v288
    %v290 = vmul.f32 %v277, 1.442695
    %v291 = vpow.pop %v290
    %v292 = vmul.f32 %v278, 1.442695
    %v293 = vpow.pop %v292
    %v294 = vmul.f32 %v279, 1.442695
    %v295 = vpow.pop %v294
    %v296 = vsel %vm247, %v281, 0.0
    %297 = vadd.xlane.f32.xlu0 %v296
    %v298 = vpop.xlane.xlu0 %297
    %v299 = vsel %vm247, %v283, 0.0
    %300 = vadd.xlane.f32.xlu0 %v299
    %v301 = vpop.xlane.xlu0 %300
    %v302 = vsel %vm247, %v285, 0.0
    %303 = vadd.xlane.f32.xlu0 %v302
    %v304 = vpop.xlane.xlu0 %303
    %v305 = vsel %vm247, %v287, 0.0
    %306 = vadd.xlane.f32.xlu0 %v305
    %v307 = vpop.xlane.xlu0 %306
    %v308 = vsel %vm247, %v289, 0.0
    %309 = vadd.xlane.f32.xlu0 %v308
    %v310 = vpop.xlane.xlu0 %309
    %v311 = vsel %vm247, %v291, 0.0
    %312 = vadd.xlane.f32.xlu0 %v311
    %v313 = vpop.xlane.xlu0 %312
    %v314 = vsel %vm247, %v293, 0.0
    %315 = vadd.xlane.f32.xlu0 %v314
    %v316 = vpop.xlane.xlu0 %315
    %v317 = vsel %vm247, %v295, 0.0
    %318 = vadd.xlane.f32.xlu0 %v317
    %v319 = vpop.xlane.xlu0 %318
    %v320 = vrcp.pop %v298
    %v321 = vmul.f32 %v281, %v320
    %v322 = vrcp.pop %v301
    %v323 = vmul.f32 %v283, %v322
    %v324 = vrcp.pop %v304
    %v325 = vmul.f32 %v285, %v324
    %v326 = vrcp.pop %v307
    %v327 = vmul.f32 %v287, %v326
    %v328 = vrcp.pop %v310
    %v329 = vmul.f32 %v289, %v328
    %v330 = vrcp.pop %v313
    %v331 = vmul.f32 %v291, %v330
    %v332 = vrcp.pop %v316
    %v333 = vmul.f32 %v293, %v332
    %v334 = vrcp.pop %v319
    %v335 = vmul.f32 %v295, %v334
    %v336 = vld [vmem:[%s2] sm:$0xff]
    %v337 = vld [vmem:[%s2 + $0x8] sm:$0xff]
    %v338 = vld [vmem:[%s2 + $0x10] sm:$0xff]
    %v339 = vld [vmem:[%s2 + $0x18] sm:$0xff]
    %v340 = vld [vmem:[%s2 + $0x20] sm:$0xff]
    %v341 = vld [vmem:[%s2 + $0x28] sm:$0xff]
    %v342 = vld [vmem:[%s2 + $0x30] sm:$0xff]
    %v343 = vld [vmem:[%s2 + $0x38] sm:$0xff]
    %v344 = vld [vmem:[%s4] sm:$0xff]
    %v345 = vld [vmem:[%s4 + $0x8] sm:$0xff]
    %v346 = vld [vmem:[%s4 + $0x10] sm:$0xff]
    %v347 = vld [vmem:[%s4 + $0x18] sm:$0xff]
    %vm348 = vcmask 261120
    %v350 = vsel %vm348, %v336, 0
    %v353 = vsel %vm348, %v337, 0
    %v356 = vsel %vm348, %v338, 0
    %v359 = vsel %vm348, %v339, 0
    %v362 = vsel %vm348, %v340, 0
    %v365 = vsel %vm348, %v341, 0
    %v368 = vsel %vm348, %v342, 0
    %v371 = vsel %vm348, %v343, 0
    %373 = vmatprep.subr.mxu0 0.0
    %374 = vmatpush1.msra.mxu0 %v344
    %375 = vmatprep.subr.mxu0 0.0
    %376 = vmatpush1.msra.mxu0 %v345
    %377 = vmatprep.subr.mxu0 0.0
    %378 = vmatpush1.msra.mxu0 %v346
    %379 = vmatprep.subr.mxu0 0.0
    %380 = vmatpush1.msra.mxu0 %v347
    %381 = vmatprep.subr.mxu0 0.0
    %382 = vmatpush1.msra.mxu0 0.0
    %383 = vmatprep.subr.mxu0 0.0
    %384 = vmatpush1.msra.mxu0 0.0
    %385 = vmatprep.subr.mxu0 0.0
    %386 = vmatpush1.msra.mxu0 0.0
    %387 = vmatprep.subr.mxu0 0.0
    %388 = vmatpush1.msra.mxu0 0.0
    %389 = vmatprep.subr.mxu0 0.0
    %390 = vmatpush1.msra.mxu0 0.0
    %391 = vmatprep.subr.mxu0 0.0
    %392 = vmatpush1.msra.mxu0 0.0
    %393 = vmatprep.subr.mxu0 0.0
    %394 = vmatpush1.msra.mxu0 0.0
    %395 = vmatprep.subr.mxu0 0.0
    %396 = vmatpush1.msra.mxu0 0.0
    %397 = vmatprep.subr.mxu0 0.0
    %398 = vmatpush1.msra.mxu0 0.0
    %399 = vmatprep.subr.mxu0 0.0
    %400 = vmatpush1.msra.mxu0 0.0
    %401 = vmatprep.subr.mxu0 0.0
    %402 = vmatpush1.msra.mxu0 0.0
    %403 = vmatprep.subr.mxu0 0.0
    %404 = vmatpush1.msra.mxu0 0.0
    %405 = vmatprep.subr.mxu0 0.0
    %406 = vmatpush1.msra.mxu0 0.0
    %407 = vmatprep.subr.mxu0 0.0
    %408 = vmatpush1.msra.mxu0 0.0
    %409 = vmatprep.subr.mxu0 0.0
    %410 = vmatpush1.msra.mxu0 0.0
    %411 = vmatprep.subr.mxu0 0.0
    %412 = vmatpush1.msra.mxu0 0.0
    %413 = vmatprep.subr.mxu0 0.0
    %414 = vmatpush1.msra.mxu0 0.0
    %415 = vmatprep.subr.mxu0 0.0
    %416 = vmatpush1.msra.mxu0 0.0
    %417 = vmatprep.subr.mxu0 0.0
    %418 = vmatpush1.msra.mxu0 0.0
    %419 = vmatprep.subr.mxu0 0.0
    %420 = vmatpush1.msra.mxu0 0.0
    %421 = vmatprep.subr.mxu0 0.0
    %422 = vmatpush1.msra.mxu0 0.0
    %423 = vmatprep.subr.mxu0 0.0
    %424 = vmatpush1.msra.mxu0 0.0
    %425 = vmatprep.subr.mxu0 0.0
    %426 = vmatpush1.msra.mxu0 0.0
    %427 = vmatprep.subr.mxu0 0.0
    %428 = vmatpush1.msra.mxu0 0.0
    %429 = vmatprep.subr.mxu0 0.0
    %430 = vmatpush1.msra.mxu0 0.0
    %431 = vmatprep.subr.mxu0 0.0
    %432 = vmatpush1.msra.mxu0 0.0
    %433 = vmatprep.subr.mxu0 0.0
    %434 = vmatpush1.msra.mxu0 0.0
    %435 = vmatprep.subr.mxu0 0.0
    %436 = vmatpush1.msra.mxu0 0.0
    %437 = vmatprep.mubr.f32.mxu0 0.0
    %438 = vmatmul.mubr.f32.gmra.mrb[0].mxu0 %v350
    %v439 = vpop.f32.mrb[0].mxu0
    %v440 = vadd.f32 0.0, %v439
    %v441 = vpop.f32.mrb[0].mxu0
    %442 = vmatprep.mubr.f32.mxu0 0.0
    %443 = vmatmul.mubr.f32.gmra.mrb[0].mxu0 %v353
    %v444 = vpop.f32.mrb[0].mxu0
    %v445 = vadd.f32 0.0, %v444
    %v446 = vpop.f32.mrb[0].mxu0
    %447 = vmatprep.mubr.f32.mxu0 0.0
    %448 = vmatmul.mubr.f32.gmra.mrb[0].mxu0 %v356
    %v449 = vpop.f32.mrb[0].mxu0
    %v450 = vadd.f32 0.0, %v449
    %v451 = vpop.f32.mrb[0].mxu0
    %452 = vmatprep.mubr.f32.mxu0 0.0
    %453 = vmatmul.mubr.f32.gmra.mrb[0].mxu0 %v359
    %v454 = vpop.f32.mrb[0].mxu0
    %v455 = vadd.f32 0.0, %v454
    %v456 = vpop.f32.mrb[0].mxu0
    %457 = vmatprep.mubr.f32.mxu0 0.0
    %458 = vmatmul.mubr.f32.gmra.mrb[0].mxu0 %v362
    %v459 = vpop.f32.mrb[0].mxu0
    %v460 = vadd.f32 0.0, %v459
    %v461 = vpop.f32.mrb[0].mxu0
    %462 = vmatprep.mubr.f32.mxu0 0.0
    %463 = vmatmul.mubr.f32.gmra.mrb[0].mxu0 %v365
    %v464 = vpop.f32.mrb[0].mxu0
    %v465 = vadd.f32 0.0, %v464
    %v466 = vpop.f32.mrb[0].mxu0
    %467 = vmatprep.mubr.f32.mxu0 0.0
    %468 = vmatmul.mubr.f32.gmra.mrb[0].mxu0 %v368
    %v469 = vpop.f32.mrb[0].mxu0
    %v470 = vadd.f32 0.0, %v469
    %v471 = vpop.f32.mrb[0].mxu0
    %472 = vmatprep.mubr.f32.mxu0 0.0
    %473 = vmatmul.mubr.f32.gmra.mrb[0].mxu0 %v371
    %v474 = vpop.f32.mrb[0].mxu0
    %v475 = vadd.f32 0.0, %v474
    %v476 = vpop.f32.mrb[0].mxu0
    %477 = vdwg.mxu0
    %v479 = vsel %vm247, %v321, 0
    %v482 = vsel %vm247, %v323, 0
    %v485 = vsel %vm247, %v325, 0
    %v488 = vsel %vm247, %v327, 0
    %v491 = vsel %vm247, %v329, 0
    %v494 = vsel %vm247, %v331, 0
    %v497 = vsel %vm247, %v333, 0
    %v500 = vsel %vm247, %v335, 0
    %502 = vmatprep.subr.mxu0 0.0
    %503 = vmatpush1.msra.mxu0 %v440
    %504 = vmatprep.subr.mxu0 0.0
    %505 = vmatpush1.msra.mxu0 %v445
    %506 = vmatprep.subr.mxu0 0.0
    %507 = vmatpush1.msra.mxu0 %v450
    %508 = vmatprep.subr.mxu0 0.0
    %509 = vmatpush1.msra.mxu0 %v455
    %510 = vmatprep.subr.mxu0 0.0
    %511 = vmatpush1.msra.mxu0 %v460
    %512 = vmatprep.subr.mxu0 0.0
    %513 = vmatpush1.msra.mxu0 %v465
    %514 = vmatprep.subr.mxu0 0.0
    %515 = vmatpush1.msra.mxu0 %v470
    %516 = vmatprep.subr.mxu0 0.0
    %517 = vmatpush1.msra.mxu0 %v475
    %518 = vmatprep.subr.mxu0 0.0
    %519 = vmatpush1.msra.mxu0 0.0
    %520 = vmatprep.subr.mxu0 0.0
    %521 = vmatpush1.msra.mxu0 0.0
    %522 = vmatprep.subr.mxu0 0.0
    %523 = vmatpush1.msra.mxu0 0.0
    %524 = vmatprep.subr.mxu0 0.0
    %525 = vmatpush1.msra.mxu0 0.0
    %526 = vmatprep.subr.mxu0 0.0
    %527 = vmatpush1.msra.mxu0 0.0
    %528 = vmatprep.subr.mxu0 0.0
    %529 = vmatpush1.msra.mxu0 0.0
    %530 = vmatprep.subr.mxu0 0.0
    %531 = vmatpush1.msra.mxu0 0.0
    %532 = vmatprep.subr.mxu0 0.0
    %533 = vmatpush1.msra.mxu0 0.0
    %534 = vmatprep.subr.mxu0 0.0
    %535 = vmatpush1.msra.mxu0 0.0
    %536 = vmatprep.subr.mxu0 0.0
    %537 = vmatpush1.msra.mxu0 0.0
    %538 = vmatprep.subr.mxu0 0.0
    %539 = vmatpush1.msra.mxu0 0.0
    %540 = vmatprep.subr.mxu0 0.0
    %541 = vmatpush1.msra.mxu0 0.0
    %542 = vmatprep.subr.mxu0 0.0
    %543 = vmatpush1.msra.mxu0 0.0
    %544 = vmatprep.subr.mxu0 0.0
    %545 = vmatpush1.msra.mxu0 0.0
    %546 = vmatprep.subr.mxu0 0.0
    %547 = vmatpush1.msra.mxu0 0.0
    %548 = vmatprep.subr.mxu0 0.0
    %549 = vmatpush1.msra.mxu0 0.0
    %550 = vmatprep.subr.mxu0 0.0
    %551 = vmatpush1.msra.mxu0 0.0
    %552 = vmatprep.subr.mxu0 0.0
    %553 = vmatpush1.msra.mxu0 0.0
    %554 = vmatprep.subr.mxu0 0.0
    %555 = vmatpush1.msra.mxu0 0.0
    %556 = vmatprep.subr.mxu0 0.0
    %557 = vmatpush1.msra.mxu0 0.0
    %558 = vmatprep.subr.mxu0 0.0
    %559 = vmatpush1.msra.mxu0 0.0
    %560 = vmatprep.subr.mxu0 0.0
    %561 = vmatpush1.msra.mxu0 0.0
    %562 = vmatprep.subr.mxu0 0.0
    %563 = vmatpush1.msra.mxu0 0.0
    %564 = vmatprep.subr.mxu0 0.0
    %565 = vmatpush1.msra.mxu0 0.0
    %566 = vmatprep.mubr.f32.mxu0 0.0
    %567 = vmatmul.mubr.f32.gmra.mrb[0].mxu0 %v479
    %v568 = vpop.f32.mrb[0].mxu0
    %v569 = vadd.f32 0.0, %v568
    %v570 = vpop.f32.mrb[0].mxu0
    %571 = vmatprep.mubr.f32.mxu0 0.0
    %572 = vmatmul.mubr.f32.gmra.mrb[0].mxu0 %v482
    %v573 = vpop.f32.mrb[0].mxu0
    %v574 = vadd.f32 0.0, %v573
    %v575 = vpop.f32.mrb[0].mxu0
    %576 = vmatprep.mubr.f32.mxu0 0.0
    %577 = vmatmul.mubr.f32.gmra.mrb[0].mxu0 %v485
    %v578 = vpop.f32.mrb[0].mxu0
    %v579 = vadd.f32 0.0, %v578
    %v580 = vpop.f32.mrb[0].mxu0
    %581 = vmatprep.mubr.f32.mxu0 0.0
    %582 = vmatmul.mubr.f32.gmra.mrb[0].mxu0 %v488
    %v583 = vpop.f32.mrb[0].mxu0
    %v584 = vadd.f32 0.0, %v583
    %v585 = vpop.f32.mrb[0].mxu0
    %586 = vmatprep.mubr.f32.mxu0 0.0
    %587 = vmatmul.mubr.f32.gmra.mrb[0].mxu0 %v491
    %v588 = vpop.f32.mrb[0].mxu0
    %v589 = vadd.f32 0.0, %v588
    %v590 = vpop.f32.mrb[0].mxu0
    %591 = vmatprep.mubr.f32.mxu0 0.0
    %592 = vmatmul.mubr.f32.gmra.mrb[0].mxu0 %v494
    %v593 = vpop.f32.mrb[0].mxu0
    %v594 = vadd.f32 0.0, %v593
    %v595 = vpop.f32.mrb[0].mxu0
    %596 = vmatprep.mubr.f32.mxu0 0.0
    %597 = vmatmul.mubr.f32.gmra.mrb[0].mxu0 %v497
    %v598 = vpop.f32.mrb[0].mxu0
    %v599 = vadd.f32 0.0, %v598
    %v600 = vpop.f32.mrb[0].mxu0
    %601 = vmatprep.mubr.f32.mxu0 0.0
    %602 = vmatmul.mubr.f32.gmra.mrb[0].mxu0 %v500
    %v603 = vpop.f32.mrb[0].mxu0
    %v604 = vadd.f32 0.0, %v603
    %v605 = vpop.f32.mrb[0].mxu0
    %606 = vdwg.mxu0
    %v607 = vadd.f32 %v569, %v574
    %v608 = vadd.f32 %v589, %v594
    %v609 = vadd.f32 %v607, %v579
    %v610 = vadd.f32 %v608, %v599
    %v611 = vadd.f32 %v609, %v584
    %v612 = vadd.f32 %v610, %v604
    %v613 = vld [vmem:[%s5] sm:$0x1]
    %v615 = vlaneseq
    %v616 = vshrl.u32 %v615, 7
    %v617 = vsub.s32 0, %v616
    %v618 = vrot.slane %v613, %v617
    %v620 = vadd.f32 %v611, %v618
    %v621 = vadd.f32 %v612, %v618
    %622 = vst.msk [vmem:[#allocation2] sm:$0xff] %vm348, %v620
    %623 = vst.msk [vmem:[#allocation2 + $0x8] sm:$0xff] %vm348, %v621
    %v624 = vadd.f32 %v321, %v323
    %v625 = vadd.f32 %v329, %v331
    %v626 = vadd.f32 %v624, %v325
    %v627 = vadd.f32 %v625, %v333
    %v628 = vadd.f32 %v626, %v327
    %v629 = vadd.f32 %v627, %v335
    %630 = vst.msk [vmem:[#allocation4] sm:$0xff] %vm348, %v628
    %632 = vrot.lane.b32.xlu0 %v629, 96
    %v633 = vpop.permute.xlu0 %632
    %s635 = scalar_lea.vmem [#allocation4], 8
    %636 = vst.msk [vmem:[%s635] sm:$0xff] %vm348, %v633
    // Predicated region
    $region26: #{tpu_custom_call.1} parent=1 // pred_check
      _
    $region27: #{tpu_custom_call.1} parent=1 // pred_check_branch
      %638 = sbr.rel (0) target = $region29
    $region28: #{tpu_custom_call.1} parent=1 // pred_region
      %s640 = ssub.s32 256, 256
      %641 = vsyncadd [#allocation3], %s640
      %s642 = sshll.u32 [#allocation2], 4
      %s643 = int_to_ptr.vmem [resolvable:$true] %s642
      %648 = dma.vmem_to_hbm [thread:$0]  %s643, 256, %s6, [#allocation3], 128, 128, 8
    $region29: #{tpu_custom_call.1} parent=1 // pred_fallthru
      _
    // Predicated region
    $region30: #{tpu_custom_call.1} parent=1 // pred_check
      _
    $region31: #{tpu_custom_call.1} parent=1 // pred_check_branch
      %650 = sbr.rel (0) target = $region33
    $region32: #{tpu_custom_call.1} parent=1 // pred_region
      %s652 = ssub.s32 256, 256
      %653 = vsyncadd [#allocation5], %s652
      %s654 = sshll.u32 [#allocation4], 4
      %s655 = int_to_ptr.vmem [resolvable:$true] %s654
      %660 = dma.vmem_to_hbm [thread:$0]  %s655, 256, %s7, [#allocation5], 128, 128, 8
    $region33: #{tpu_custom_call.1} parent=1 // pred_fallthru
      _
    // Predicated region
    $region34: #{tpu_custom_call.1} parent=1 // pred_check
      _
    $region35: #{tpu_custom_call.1} parent=1 // pred_check_branch
      %662 = sbr.rel (0) target = $region37
    $region36: #{tpu_custom_call.1} parent=1 // pred_region
      %663 = dma.done [#allocation3], 256
    $region37: #{tpu_custom_call.1} parent=1 // pred_fallthru
      _
    // Predicated region
    $region38: #{tpu_custom_call.1} parent=1 // pred_check
      _
    $region39: #{tpu_custom_call.1} parent=1 // pred_check_branch
      %665 = sbr.rel (0) target = $region41
    $region40: #{tpu_custom_call.1} parent=1 // pred_region
      %666 = dma.done [#allocation5], 256
    $region41: #{tpu_custom_call.1} parent=1 // pred_fallthru
      _
    %667 = vsyncpa [#allocation3], 1
    %668 = vsyncpa [#allocation5], 1

</llo_original>
